<compile_context>
chip_gen: v7x
topology: tpu7x:2x2x1
jax: 0.10.0
libtpu: 0.0.40
codegen_flags: <defaults>
</compile_context>

<pallas_src>
import functools
import math

import jax
import jax.numpy as jnp
from jax.experimental import pallas as pl
from jax.experimental.pallas import tpu as pltpu


VMEM_LIMIT = 48 * 1024 * 1024  # below v7x's 64 MiB physical, above default scoped limits


def _pick(dim, pref):
    """Tile size: preferred tile if it divides dim, else the full dim."""
    return pref if dim % pref == 0 else dim


# ----------------------------- Pallas kernels -----------------------------

def _norm_linear_kernel(x_ref, lnw_ref, w_ref, o_ref, *, eps):
    # Fused RMSNorm + matmul.  x: (tm, H), lnw: (1, H), w: (H, tn).
    x = x_ref[...].astype(jnp.float32)
    var = jnp.mean(x * x, axis=-1, keepdims=True)
    xn = x * jax.lax.rsqrt(var + eps) * lnw_ref[...].astype(jnp.float32)
    o_ref[...] = jnp.dot(
        xn, w_ref[...].astype(jnp.float32), preferred_element_type=jnp.float32
    ).astype(o_ref.dtype)


def _norm_swiglu_kernel(x_ref, lnw_ref, gt_ref, ut_ref, o_ref, *, eps):
    # Fused RMSNorm + gate/up projections + SwiGLU.
    # x: (tm, H), gt/ut: (H, tn)  ->  o: (tm, tn)
    x = x_ref[...].astype(jnp.float32)
    var = jnp.mean(x * x, axis=-1, keepdims=True)
    xn = x * jax.lax.rsqrt(var + eps) * lnw_ref[...].astype(jnp.float32)
    g = jnp.dot(xn, gt_ref[...].astype(jnp.float32), preferred_element_type=jnp.float32)
    u = jnp.dot(xn, ut_ref[...].astype(jnp.float32), preferred_element_type=jnp.float32)
    o_ref[...] = ((g * jax.nn.sigmoid(g)) * u).astype(o_ref.dtype)


def _matmul_residual_kernel(x_ref, w_ref, res_ref, o_ref, acc_ref):
    # out = res + x @ w, K-tiled with f32 accumulator scratch.
    k = pl.program_id(2)

    @pl.when(k == 0)
    def _():
        acc_ref[...] = jnp.zeros_like(acc_ref)

    acc_ref[...] += jnp.dot(
        x_ref[...], w_ref[...], preferred_element_type=jnp.float32
    )

    @pl.when(k == pl.num_programs(2) - 1)
    def _():
        o_ref[...] = (acc_ref[...] + res_ref[...].astype(jnp.float32)).astype(o_ref.dtype)


def _rope_kernel(x_ref, cos_ref, sin_ref, o_ref, *, out_scale):
    # One (batch, head) tile: x/cos/sin: (S, D).  out_scale folds in the
    # attention 1/sqrt(D) scale for Q (1.0 for K).
    x = x_ref[...].astype(jnp.float32)
    cos = cos_ref[...].astype(jnp.float32)
    sin = sin_ref[...].astype(jnp.float32)
    half = x.shape[-1] // 2
    xr = jnp.concatenate([-x[:, half:], x[:, :half]], axis=-1)
    o_ref[...] = ((x * cos + xr * sin) * out_scale).astype(o_ref.dtype)


def _flash_attn_kernel(q_ref, k_ref, v_ref, mask_ref, o_ref,
                       m_sc, l_sc, acc_sc):
    # Flash-style online softmax over kv tiles.
    # q: (tq, D) [already pre-scaled by 1/sqrt(D)],
    # k/v: (tkv, D) [indexed by kv-head via BlockSpec], mask: (tq, tkv)
    ki = pl.program_id(3)

    @pl.when(ki == 0)
    def _():
        m_sc[...] = jnp.full(m_sc.shape, -jnp.inf, jnp.float32)
        l_sc[...] = jnp.zeros(l_sc.shape, jnp.float32)
        acc_sc[...] = jnp.zeros(acc_sc.shape, jnp.float32)

    q = q_ref[...].astype(jnp.float32)
    k = k_ref[...].astype(jnp.float32)
    v = v_ref[...].astype(jnp.float32)

    s = jnp.dot(q, k.T, preferred_element_type=jnp.float32)
    s = s + mask_ref[...].astype(jnp.float32)

    m_prev = m_sc[...]
    m_new = jnp.maximum(m_prev, jnp.max(s, axis=-1, keepdims=True))
    alpha = jnp.exp(m_prev - m_new)
    p = jnp.exp(s - m_new)

    l_sc[...] = alpha * l_sc[...] + jnp.sum(p, axis=-1, keepdims=True)
    acc_sc[...] = alpha * acc_sc[...] + jnp.dot(p, v, preferred_element_type=jnp.float32)
    m_sc[...] = m_new

    @pl.when(ki == pl.num_programs(3) - 1)
    def _():
        o_ref[...] = (acc_sc[...] * pl.reciprocal(l_sc[...], approx=True)
                      ).astype(o_ref.dtype)


# ----------------------------- wrappers -----------------------------

def norm_linear(x2d, ln_w, w_t, eps):
    # Fused RMSNorm + projection; w_t is (in, out) layout (pre-transposed once).
    M, H = x2d.shape
    N = w_t.shape[1]
    tm, tn = _pick(M, 256), _pick(N, 256)
    return pl.pallas_call(
        functools.partial(_norm_linear_kernel, eps=eps),
        out_shape=jax.ShapeDtypeStruct((M, N), x2d.dtype),
        grid=(M // tm, N // tn),
        in_specs=[
            pl.BlockSpec((tm, H), lambda i, j: (i, 0)),
            pl.BlockSpec((1, H), lambda i, j: (0, 0)),
            pl.BlockSpec((H, tn), lambda i, j: (0, j)),
        ],
        out_specs=pl.BlockSpec((tm, tn), lambda i, j: (i, j)),
        compiler_params=pltpu.CompilerParams(
            dimension_semantics=("parallel", "parallel"),
            vmem_limit_bytes=VMEM_LIMIT),
    )(x2d, ln_w, w_t)


def norm_swiglu(x2d, ln_w, wg_t, wu_t, eps):
    M, H = x2d.shape
    I = wg_t.shape[1]
    tm, tn = _pick(M, 256), _pick(I, 256)
    return pl.pallas_call(
        functools.partial(_norm_swiglu_kernel, eps=eps),
        out_shape=jax.ShapeDtypeStruct((M, I), x2d.dtype),
        grid=(M // tm, I // tn),
        in_specs=[
            pl.BlockSpec((tm, H), lambda i, j: (i, 0)),
            pl.BlockSpec((1, H), lambda i, j: (0, 0)),
            pl.BlockSpec((H, tn), lambda i, j: (0, j)),
            pl.BlockSpec((H, tn), lambda i, j: (0, j)),
        ],
        out_specs=pl.BlockSpec((tm, tn), lambda i, j: (i, j)),
        compiler_params=pltpu.CompilerParams(
            dimension_semantics=("parallel", "parallel"),
            vmem_limit_bytes=VMEM_LIMIT),
    )(x2d, ln_w, wg_t, wu_t)


def matmul_residual(x2d, w_t, res2d):
    # out = res + x @ w, K-tiled accumulation.
    M, K = x2d.shape
    N = w_t.shape[1]
    tm, tn, tk = _pick(M, 256), _pick(N, 256), _pick(K, 512)
    return pl.pallas_call(
        _matmul_residual_kernel,
        out_shape=jax.ShapeDtypeStruct((M, N), x2d.dtype),
        grid=(M // tm, N // tn, K // tk),
        in_specs=[
            pl.BlockSpec((tm, tk), lambda i, j, k: (i, k)),
            pl.BlockSpec((tk, tn), lambda i, j, k: (k, j)),
            pl.BlockSpec((tm, tn), lambda i, j, k: (i, j)),
        ],
        out_specs=pl.BlockSpec((tm, tn), lambda i, j, k: (i, j)),
        scratch_shapes=[pltpu.VMEM((tm, tn), jnp.float32)],
        compiler_params=pltpu.CompilerParams(
            dimension_semantics=("parallel", "parallel", "arbitrary"),
            vmem_limit_bytes=VMEM_LIMIT),
    )(x2d, w_t, res2d)


def apply_rope(x, cos_pos, sin_pos, out_scale=1.0):
    # x: (B, nheads, S, D); cos/sin: (B, S, D)
    B, nh, S, D = x.shape
    return pl.pallas_call(
        functools.partial(_rope_kernel, out_scale=out_scale),
        out_shape=jax.ShapeDtypeStruct(x.shape, x.dtype),
        grid=(B, nh),
        in_specs=[
            pl.BlockSpec((None, None, S, D), lambda b, h: (b, h, 0, 0)),
            pl.BlockSpec((None, S, D), lambda b, h: (b, 0, 0)),
            pl.BlockSpec((None, S, D), lambda b, h: (b, 0, 0)),
        ],
        out_specs=pl.BlockSpec((None, None, S, D), lambda b, h: (b, h, 0, 0)),
        compiler_params=pltpu.CompilerParams(
            dimension_semantics=("parallel", "parallel"),
            vmem_limit_bytes=VMEM_LIMIT),
    )(x, cos_pos, sin_pos)


def flash_attention(q, k, v, mask, n_rep, tq_pref=128, tkv_pref=128):
    # q: (B, nH, S, D) [pre-scaled]; k/v: (B, nKV, S, D); mask: (B, 1, S, S).
    # GQA handled via BlockSpec index map (h // n_rep) — no repeat_kv materialization.
    B, nH, S, D = q.shape
    tq, tkv = _pick(S, tq_pref), _pick(S, tkv_pref)
    return pl.pallas_call(
        _flash_attn_kernel,
        out_shape=jax.ShapeDtypeStruct((B, nH, S, D), q.dtype),
        grid=(B, nH, S // tq, S // tkv),
        in_specs=[
            pl.BlockSpec((None, None, tq, D), lambda b, h, qi, ki: (b, h, qi, 0)),
            pl.BlockSpec((None, None, tkv, D),
                         lambda b, h, qi, ki: (b, h // n_rep, ki, 0)),
            pl.BlockSpec((None, None, tkv, D),
                         lambda b, h, qi, ki: (b, h // n_rep, ki, 0)),
            pl.BlockSpec((None, None, tq, tkv), lambda b, h, qi, ki: (b, 0, qi, ki)),
        ],
        out_specs=pl.BlockSpec((None, None, tq, D), lambda b, h, qi, ki: (b, h, qi, 0)),
        scratch_shapes=[
            pltpu.VMEM((tq, 1), jnp.float32),   # running max m
            pltpu.VMEM((tq, 1), jnp.float32),   # running denom l
            pltpu.VMEM((tq, D), jnp.float32),   # output accumulator
        ],
        compiler_params=pltpu.CompilerParams(
            dimension_semantics=("parallel", "parallel", "parallel", "arbitrary"),
            vmem_limit_bytes=VMEM_LIMIT),
    )(q, k, v, mask)


# ----------------------------- decoder layer -----------------------------

def prepare_params(p):
    """One-time weight prep (outside the hot path): (in, out) layout + fused QKV."""
    return {
        "w_qkv_t": jnp.concatenate([p["wq"].T, p["wk"].T, p["wv"].T], axis=1),
        "wo_t": p["wo"].T,
        "w_gate_t": p["w_gate"].T,
        "w_up_t": p["w_up"].T,
        "w_down_t": p["w_down"].T,
        "ln1_w": p["ln1_w"].reshape(1, -1),
        "ln2_w": p["ln2_w"].reshape(1, -1),
    }


def llama_decoder_layer(hidden_states, attention_mask, position_ids, prep, cfg):
    B, S, H = hidden_states.shape
    nH, nKV, D = cfg["num_heads"], cfg["num_kv_heads"], cfg["head_dim"]
    n_rep = nH // nKV
    eps = cfg["rms_norm_eps"]

    # rotary cache (matches LlamaRotaryEmbedding buffers) — plain-JAX glue
    inv_freq = 1.0 / (cfg["rope_theta"] ** (jnp.arange(0, D, 2, dtype=jnp.float32) / D))
    t = jnp.arange(S, dtype=jnp.float32)
    freqs = jnp.einsum("i,j->ij", t, inv_freq)
    emb = jnp.concatenate([freqs, freqs], axis=-1)        # (S, D)
    cos_pos = jnp.cos(emb)[position_ids]                  # (B, S, D)
    sin_pos = jnp.sin(emb)[position_ids]

    x2d = hidden_states.reshape(B * S, H)

    # fused input_layernorm + Q/K/V projection (single GEMM, one read of x)
    qkv = norm_linear(x2d, prep["ln1_w"], prep["w_qkv_t"], eps)
    q = qkv[:, : nH * D].reshape(B, S, nH, D).transpose(0, 2, 1, 3)
    k = qkv[:, nH * D:(nH + nKV) * D].reshape(B, S, nKV, D).transpose(0, 2, 1, 3)
    v = qkv[:, (nH + nKV) * D:].reshape(B, S, nKV, D).transpose(0, 2, 1, 3)

    # RoPE hoisted out of the attention loop (K rotated once per KV head).
    # 1/sqrt(D) attention scale folded into the Q pass (free VPU multiply here,
    # saves a per-kv-tile multiply in the flash inner loop).
    scale = 1.0 / math.sqrt(D)
    q = apply_rope(q, cos_pos, sin_pos, out_scale=scale)
    k = apply_rope(k, cos_pos, sin_pos, out_scale=1.0)

    # flash attention with in-BlockSpec GQA (no repeat_kv materialization)
    attn = flash_attention(q, k, v, attention_mask, n_rep)
    attn2d = attn.transpose(0, 2, 1, 3).reshape(B * S, nH * D)

    # o_proj + residual add (K-tiled accumulation)
    h2d = matmul_residual(attn2d, prep["wo_t"], x2d)

    # fused post_attention_layernorm + gate/up + SwiGLU
    hmid = norm_swiglu(h2d, prep["ln2_w"], prep["w_gate_t"], prep["w_up_t"], eps)

    # down_proj + residual add (K-tiled accumulation over intermediate dim)
    out2d = matmul_residual(hmid, prep["w_down_t"], h2d)
    return out2d.reshape(B, S, H)


# ----------------------------- pure-JAX reference -----------------------------

def reference_decoder_layer(x, mask, position_ids, params, cfg):
    B, S, H = x.shape
    nH, nKV, D = cfg["num_heads"], cfg["num_kv_heads"], cfg["head_dim"]
    n_rep = nH // nKV
    eps = cfg["rms_norm_eps"]

    def rmsn(h, w):
        hf = h.astype(jnp.float32)
        var = jnp.mean(hf * hf, axis=-1, keepdims=True)
        return (w * (hf * jax.lax.rsqrt(var + eps))).astype(h.dtype)

    inv_freq = 1.0 / (cfg["rope_theta"] ** (jnp.arange(0, D, 2, dtype=jnp.float32) / D))
    t = jnp.arange(S, dtype=jnp.float32)
    emb = jnp.concatenate([jnp.outer(t, inv_freq)] * 2, axis=-1)
    cos = jnp.cos(emb)[position_ids][:, None]            # (B,1,S,D)
    sin = jnp.sin(emb)[position_ids][:, None]

    residual = x
    hn = rmsn(x, params["ln1_w"])
    q = (hn @ params["wq"].T).reshape(B, S, nH, D).transpose(0, 2, 1, 3)
    k = (hn @ params["wk"].T).reshape(B, S, nKV, D).transpose(0, 2, 1, 3)
    v = (hn @ params["wv"].T).reshape(B, S, nKV, D).transpose(0, 2, 1, 3)

    def rot(a):
        return jnp.concatenate([-a[..., D // 2:], a[..., :D // 2]], axis=-1)

    q = q * cos + rot(q) * sin
    k = k * cos + rot(k) * sin
    k = jnp.broadcast_to(k[:, :, None], (B, nKV, n_rep, S, D)).reshape(B, nH, S, D)
    v = jnp.broadcast_to(v[:, :, None], (B, nKV, n_rep, S, D)).reshape(B, nH, S, D)

    s = jnp.einsum("bhqd,bhkd->bhqk", q, k) / math.sqrt(D) + mask
    p = jax.nn.softmax(s.astype(jnp.float32), axis=-1).astype(q.dtype)
    a = jnp.einsum("bhqk,bhkd->bhqd", p, v)
    a = a.transpose(0, 2, 1, 3).reshape(B, S, H)
    h = residual + a @ params["wo"].T

    residual = h
    hn = rmsn(h, params["ln2_w"])
    g = hn @ params["w_gate"].T
    u = hn @ params["w_up"].T
    return residual + (g * jax.nn.sigmoid(g) * u) @ params["w_down"].T


# ----------------------------- main -----------------------------

if __name__ == "__main__":
    B, S, H = 2, 8, 32
    nH, nKV = 4, 2
    D = H // nH
    I = 64
    cfg = dict(num_heads=nH, num_kv_heads=nKV, head_dim=D,
               rope_theta=10000.0, rms_norm_eps=1e-6)

    key = jax.random.PRNGKey(0)
    ks = jax.random.split(key, 10)
    scale = 0.02
    params = {
        "wq": scale * jax.random.normal(ks[0], (nH * D, H), jnp.float32),
        "wk": scale * jax.random.normal(ks[1], (nKV * D, H), jnp.float32),
        "wv": scale * jax.random.normal(ks[2], (nKV * D, H), jnp.float32),
        "wo": scale * jax.random.normal(ks[3], (H, nH * D), jnp.float32),
        "w_gate": scale * jax.random.normal(ks[4], (I, H), jnp.float32),
        "w_up": scale * jax.random.normal(ks[5], (I, H), jnp.float32),
        "w_down": scale * jax.random.normal(ks[6], (H, I), jnp.float32),
        "ln1_w": 1.0 + 0.1 * jax.random.normal(ks[7], (H,), jnp.float32),
        "ln2_w": 1.0 + 0.1 * jax.random.normal(ks[8], (H,), jnp.float32),
    }
    prep = prepare_params(params)   # one-time weight layout prep (outside hot path)

    hidden_states = jax.random.normal(ks[9], (B, S, H), jnp.float32)
    position_ids = jnp.broadcast_to(jnp.arange(S)[None, :], (B, S))

    # standard HF-style causal additive mask (B, 1, S, S)
    neg = jnp.finfo(jnp.float32).min
    causal = jnp.where(jnp.tril(jnp.ones((S, S), bool)), 0.0, neg)
    attention_mask = jnp.broadcast_to(causal[None, None], (B, 1, S, S)).astype(jnp.float32)

    out = llama_decoder_layer(hidden_states, attention_mask, position_ids, prep, cfg)
    out = jax.block_until_ready(out)

    ref = reference_decoder_layer(hidden_states, attention_mask, position_ids, params, cfg)
    assert out.shape == (B, S, H)
    err = float(jnp.max(jnp.abs(out - ref)))
    assert jnp.allclose(out, ref, atol=1e-3, rtol=1e-3), err

    # TODO(synk): attention_dropout (inference no-op) and rope_scaling variants
    # (linear / dynamic-NTK) are not implemented; default RoPE path only.
    print("KERNEL_OK")
</pallas_src>

<mosaic_0001>
module attributes {stable_mosaic.version = 11 : i64} {
  func.func @_norm_linear_kernel(%arg0: i32, %arg1: i32, %arg2: memref<16x32xf32, #tpu.memory_space<vmem>>, %arg3: memref<1x32xf32, #tpu.memory_space<vmem>>, %arg4: memref<32x64xf32, #tpu.memory_space<vmem>>, %arg5: memref<16x64xf32, #tpu.memory_space<vmem>>) attributes {dimension_semantics = [#tpu.dimension_semantics<parallel>, #tpu.dimension_semantics<parallel>], iteration_bounds = array<i64: 1, 1>, scalar_prefetch = 0 : i64, scratch_operands = 0 : i64, tpu.core_type = #tpu.core_type<tc>, window_params = [{transform_indices = @transform_0, window_bounds = array<i64: 16, 32>}, {pipeline_mode = #tpu.pipeline_mode<synchronous>, transform_indices = @transform_1, window_bounds = array<i64: 1, 32>}, {transform_indices = @transform_2, window_bounds = array<i64: 32, 64>}, {transform_indices = @transform_3, window_bounds = array<i64: 16, 64>}]} {
    %c0 = arith.constant 0 : index
    %c0_0 = arith.constant 0 : index
    %0 = vector.load %arg2[%c0, %c0_0] : memref<16x32xf32, #tpu.memory_space<vmem>>, vector<16x32xf32>
    %1 = arith.mulf %0, %0 : vector<16x32xf32>
    %cst = arith.constant dense<0.000000e+00> : vector<16xf32>
    %2 = vector.multi_reduction <add>, %1, %cst [1] : vector<16x32xf32> to vector<16xf32>
    %3 = vector.shape_cast %2 : vector<16xf32> to vector<16x1xf32>
    %cst_1 = arith.constant 3.200000e+01 : f32
    %4 = vector.broadcast %cst_1 : f32 to vector<16x1xf32>
    %5 = arith.divf %3, %4 : vector<16x1xf32>
    %cst_2 = arith.constant 9.99999997E-7 : f32
    %6 = vector.broadcast %cst_2 : f32 to vector<16x1xf32>
    %7 = arith.addf %5, %6 : vector<16x1xf32>
    %8 = math.rsqrt %7 : vector<16x1xf32>
    %9 = vector.broadcast %8 : vector<16x1xf32> to vector<16x32xf32>
    %10 = arith.mulf %0, %9 : vector<16x32xf32>
    %c0_3 = arith.constant 0 : index
    %c0_4 = arith.constant 0 : index
    %11 = vector.load %arg3[%c0_3, %c0_4] : memref<1x32xf32, #tpu.memory_space<vmem>>, vector<1x32xf32>
    %12 = vector.broadcast %11 : vector<1x32xf32> to vector<16x32xf32>
    %13 = arith.mulf %10, %12 : vector<16x32xf32>
    %c0_5 = arith.constant 0 : index
    %c0_6 = arith.constant 0 : index
    %14 = vector.load %arg4[%c0_5, %c0_6] : memref<32x64xf32, #tpu.memory_space<vmem>>, vector<32x64xf32>
    %cst_7 = arith.constant dense<0.000000e+00> : vector<16x64xf32>
    %15 = tpu.matmul %13, %14, %cst_7 {dimension_numbers = #tpu.dot_dimension_numbers<[1], [0], [0], [1], [0, 0, 1, 1], [], []>} : vector<16x32xf32>, vector<32x64xf32>, vector<16x64xf32> -> vector<16x64xf32>
    %c0_8 = arith.constant 0 : index
    %c0_9 = arith.constant 0 : index
    %16 = vector.load %arg5[%c0_8, %c0_9] : memref<16x64xf32, #tpu.memory_space<vmem>>, vector<16x64xf32>
    tpu.vector_store %arg5[%c0_8, %c0_9], %15 {strides = array<i32>} : memref<16x64xf32, #tpu.memory_space<vmem>>, vector<16x64xf32>,
    return
  }
  func.func @transform_0(%arg0: i32, %arg1: i32) -> (i32, i32) {
    %c0_i32 = arith.constant 0 : i32
    %c0_i32_0 = arith.constant 0 : i32
    return %arg0, %c0_i32 : i32, i32
  }
  func.func @transform_1(%arg0: i32, %arg1: i32) -> (i32, i32) {
    %c0_i32 = arith.constant 0 : i32
    %c0_i32_0 = arith.constant 0 : i32
    %c0_i32_1 = arith.constant 0 : i32
    return %c0_i32, %c0_i32_0 : i32, i32
  }
  func.func @transform_2(%arg0: i32, %arg1: i32) -> (i32, i32) {
    %c0_i32 = arith.constant 0 : i32
    %c0_i32_0 = arith.constant 0 : i32
    return %c0_i32, %arg1 : i32, i32
  }
  func.func @transform_3(%arg0: i32, %arg1: i32) -> (i32, i32) {
    %c0_i32 = arith.constant 0 : i32
    return %arg0, %arg1 : i32, i32
  }
}

</mosaic_0001>

<llo_original>
// kernel: tpu_custom_call.1
$region0: #{tpu_custom_call.1}
  #allocation0 [shape = 'u32[]', space=smem, size = 0x4, offset = 0x4, fixed_abs, tag = 'smem constant byte address 0x4 - core index']
  #allocation1 [shape = 'u32[144,128]{1,0:T(1,128)}', space=vmem, size = 0x12000, scoped, tag = 'internal scratch']
  %s0 = inlined_call_operand.hbm [shape: f32[16,32], index: 0, kind: input, shape index: {}]
  %s1 = inlined_call_operand.vmem [shape: f32[1,32], index: 1, kind: input, shape index: {}]
  %s2 = inlined_call_operand.hbm [shape: f32[32,64], index: 2, kind: input, shape index: {}]
  %s3 = inlined_call_operand.hbm [shape: f32[16,64], index: 3, kind: output, shape index: {}]
  %s4 = sld [smem:[#allocation0]]
  $region30: #{tpu_custom_call.1} parent=0
    _
  %s6 = ssub.s32 1, %s4
  %s7 = scalar_select 0, %s6, %s4
  $region1: #{tpu_custom_call.1} parent=0
    #allocation2 [shape = 'u8[8192]{0}', space=vmem, size = 0x2000, scoped, tag = 'input window, operand 0, single buffered']
    #allocation3 [shape = 's32[1]{0}', space=sflag, size = 0x4, scoped, tag = 'scoped memory for tpu_custom_call.1']
    #allocation4 [shape = 's32[1]{0}', space=sflag, size = 0x4, scoped, tag = 'scoped memory for tpu_custom_call.1']
    #allocation5 [shape = 'u8[16384]{0}', space=vmem, size = 0x4000, scoped, tag = 'input window, operand 2, single buffered']
    #allocation6 [shape = 's32[1]{0}', space=sflag, size = 0x4, scoped, tag = 'scoped memory for tpu_custom_call.1']
    #allocation7 [shape = 'u8[8192]{0}', space=vmem, size = 0x2000, scoped, tag = 'output window, operand 0, single buffered']
    %8 = vsyncpa [#allocation3], 0
    %9 = vsyncpa [#allocation6], 0
    %10 = vsyncpa [#allocation4], 0
    // Predicated region
    $region2: #{tpu_custom_call.1} parent=1 // pred_check
      _
    $region3: #{tpu_custom_call.1} parent=1 // pred_check_branch
      %12 = sbr.rel (0) target = $region5
    $region4: #{tpu_custom_call.1} parent=1 // pred_region
      %s14 = ssub.s32 256, 256
      %15 = vsyncadd [#allocation3], %s14
      %s16 = sshll.u32 [#allocation2], 4
      %s17 = int_to_ptr.vmem [resolvable:$true] %s16
      %22 = dma.hbm_to_vmem [thread:$0]  %s0, 256, %s17, [#allocation3], 128, 128, 8
    $region5: #{tpu_custom_call.1} parent=1 // pred_fallthru
      _
    // Predicated region
    $region6: #{tpu_custom_call.1} parent=1 // pred_check
      _
    $region7: #{tpu_custom_call.1} parent=1 // pred_check_branch
      %24 = sbr.rel (0) target = $region9
    $region8: #{tpu_custom_call.1} parent=1 // pred_region
      _
    $region9: #{tpu_custom_call.1} parent=1 // pred_fallthru
      _
    // Predicated region
    $region10: #{tpu_custom_call.1} parent=1 // pred_check
      _
    $region11: #{tpu_custom_call.1} parent=1 // pred_check_branch
      %26 = sbr.rel (0) target = $region13
    $region12: #{tpu_custom_call.1} parent=1 // pred_region
      %s28 = ssub.s32 512, 512
      %29 = vsyncadd [#allocation6], %s28
      %s30 = sshll.u32 [#allocation5], 4
      %s31 = int_to_ptr.vmem [resolvable:$true] %s30
      %36 = dma.hbm_to_vmem [thread:$0]  %s2, 512, %s31, [#allocation6], 128, 128, 8
    $region13: #{tpu_custom_call.1} parent=1 // pred_fallthru
      _
    // Predicated region
    $region14: #{tpu_custom_call.1} parent=1 // pred_check
      _
    $region15: #{tpu_custom_call.1} parent=1 // pred_check_branch
      %38 = sbr.rel (0) target = $region17
    $region16: #{tpu_custom_call.1} parent=1 // pred_region
      %39 = dma.done [#allocation3], 256
    $region17: #{tpu_custom_call.1} parent=1 // pred_fallthru
      _
    // Predicated region
    $region18: #{tpu_custom_call.1} parent=1 // pred_check
      _
    $region19: #{tpu_custom_call.1} parent=1 // pred_check_branch
      %41 = sbr.rel (0) target = $region21
    $region20: #{tpu_custom_call.1} parent=1 // pred_region
      %42 = dma.done [#allocation6], 512
    $region21: #{tpu_custom_call.1} parent=1 // pred_fallthru
      _
    %v43 = vld [vmem:[#allocation2] sm:$0xff]
    %v44 = vld [vmem:[#allocation2 + $0x8] sm:$0xff]
    %v45 = vmul.f32 %v43, %v43
    %v46 = vmul.f32 %v44, %v44
    %vm47 = vcmask 261120
    %v48 = vsel %vm47, %v45, 0.0
    %49 = vadd.xlane.f32.xlu0 %v48
    %v50 = vpop.xlane.xlu0 %49
    %v51 = vsel %vm47, %v46, 0.0
    %52 = vadd.xlane.f32.xlu0 %v51
    %v53 = vpop.xlane.xlu0 %52
    %v54 = vrcp.pop 32.0
    %v55 = vmul.f32 %v50, %v54
    %v56 = vmul.f32 %v53, %v54
    %v57 = vadd.f32 %v55, 1e-06
    %v58 = vadd.f32 %v56, 1e-06
    %v59 = vrsqrt.pop %v57
    %v60 = vrsqrt.pop %v58
    %v61 = vmul.f32 %v43, %v59
    %v62 = vmul.f32 %v44, %v60
    %v63 = vld [vmem:[%s1] sm:$0x1]
    %v65 = vlaneseq
    %v66 = vshrl.u32 %v65, 7
    %v67 = vsub.s32 0, %v66
    %v68 = vrot.slane %v63, %v67
    %v70 = vmul.f32 %v61, %v68
    %v71 = vmul.f32 %v62, %v68
    %v72 = vld [vmem:[#allocation5] sm:$0xff]
    %v73 = vld [vmem:[#allocation5 + $0x8] sm:$0xff]
    %v74 = vld [vmem:[#allocation5 + $0x10] sm:$0xff]
    %v75 = vld [vmem:[#allocation5 + $0x18] sm:$0xff]
    %v77 = vsel %vm47, %v70, 0
    %v80 = vsel %vm47, %v71, 0
    %82 = vmatprep.subr.mxu0 0.0
    %83 = vmatpush1.msra.mxu0 %v72
    %84 = vmatprep.subr.mxu0 0.0
    %85 = vmatpush1.msra.mxu0 %v73
    %86 = vmatprep.subr.mxu0 0.0
    %87 = vmatpush1.msra.mxu0 %v74
    %88 = vmatprep.subr.mxu0 0.0
    %89 = vmatpush1.msra.mxu0 %v75
    %90 = vmatprep.subr.mxu0 0.0
    %91 = vmatpush1.msra.mxu0 0.0
    %92 = vmatprep.subr.mxu0 0.0
    %93 = vmatpush1.msra.mxu0 0.0
    %94 = vmatprep.subr.mxu0 0.0
    %95 = vmatpush1.msra.mxu0 0.0
    %96 = vmatprep.subr.mxu0 0.0
    %97 = vmatpush1.msra.mxu0 0.0
    %98 = vmatprep.subr.mxu0 0.0
    %99 = vmatpush1.msra.mxu0 0.0
    %100 = vmatprep.subr.mxu0 0.0
    %101 = vmatpush1.msra.mxu0 0.0
    %102 = vmatprep.subr.mxu0 0.0
    %103 = vmatpush1.msra.mxu0 0.0
    %104 = vmatprep.subr.mxu0 0.0
    %105 = vmatpush1.msra.mxu0 0.0
    %106 = vmatprep.subr.mxu0 0.0
    %107 = vmatpush1.msra.mxu0 0.0
    %108 = vmatprep.subr.mxu0 0.0
    %109 = vmatpush1.msra.mxu0 0.0
    %110 = vmatprep.subr.mxu0 0.0
    %111 = vmatpush1.msra.mxu0 0.0
    %112 = vmatprep.subr.mxu0 0.0
    %113 = vmatpush1.msra.mxu0 0.0
    %114 = vmatprep.subr.mxu0 0.0
    %115 = vmatpush1.msra.mxu0 0.0
    %116 = vmatprep.subr.mxu0 0.0
    %117 = vmatpush1.msra.mxu0 0.0
    %118 = vmatprep.subr.mxu0 0.0
    %119 = vmatpush1.msra.mxu0 0.0
    %120 = vmatprep.subr.mxu0 0.0
    %121 = vmatpush1.msra.mxu0 0.0
    %122 = vmatprep.subr.mxu0 0.0
    %123 = vmatpush1.msra.mxu0 0.0
    %124 = vmatprep.subr.mxu0 0.0
    %125 = vmatpush1.msra.mxu0 0.0
    %126 = vmatprep.subr.mxu0 0.0
    %127 = vmatpush1.msra.mxu0 0.0
    %128 = vmatprep.subr.mxu0 0.0
    %129 = vmatpush1.msra.mxu0 0.0
    %130 = vmatprep.subr.mxu0 0.0
    %131 = vmatpush1.msra.mxu0 0.0
    %132 = vmatprep.subr.mxu0 0.0
    %133 = vmatpush1.msra.mxu0 0.0
    %134 = vmatprep.subr.mxu0 0.0
    %135 = vmatpush1.msra.mxu0 0.0
    %136 = vmatprep.subr.mxu0 0.0
    %137 = vmatpush1.msra.mxu0 0.0
    %138 = vmatprep.subr.mxu0 0.0
    %139 = vmatpush1.msra.mxu0 0.0
    %140 = vmatprep.subr.mxu0 0.0
    %141 = vmatpush1.msra.mxu0 0.0
    %142 = vmatprep.subr.mxu0 0.0
    %143 = vmatpush1.msra.mxu0 0.0
    %144 = vmatprep.subr.mxu0 0.0
    %145 = vmatpush1.msra.mxu0 0.0
    %146 = vmatprep.mubr.f32.mxu0 0.0
    %147 = vmatmul.mubr.f32.gmra.mrb[0].mxu0 %v77
    %v148 = vpop.f32.mrb[0].mxu0
    %v149 = vadd.f32 0.0, %v148
    %v150 = vpop.f32.mrb[0].mxu0
    %151 = vmatprep.mubr.f32.mxu0 0.0
    %152 = vmatmul.mubr.f32.gmra.mrb[0].mxu0 %v80
    %v153 = vpop.f32.mrb[0].mxu0
    %v154 = vadd.f32 0.0, %v153
    %v155 = vpop.f32.mrb[0].mxu0
    %156 = vdwg.mxu0
    %vm157 = vcmask 523264
    %158 = vst.msk [vmem:[#allocation7] sm:$0xff] %vm157, %v149
    %159 = vst.msk [vmem:[#allocation7 + $0x8] sm:$0xff] %vm157, %v154
    // Predicated region
    $region22: #{tpu_custom_call.1} parent=1 // pred_check
      _
    $region23: #{tpu_custom_call.1} parent=1 // pred_check_branch
      %161 = sbr.rel (0) target = $region25
    $region24: #{tpu_custom_call.1} parent=1 // pred_region
      %s163 = ssub.s32 256, 256
      %164 = vsyncadd [#allocation4], %s163
      %s165 = sshll.u32 [#allocation7], 4
      %s166 = int_to_ptr.vmem [resolvable:$true] %s165
      %171 = dma.vmem_to_hbm [thread:$0]  %s166, 256, %s3, [#allocation4], 128, 128, 8
    $region25: #{tpu_custom_call.1} parent=1 // pred_fallthru
      _
    // Predicated region
    $region26: #{tpu_custom_call.1} parent=1 // pred_check
      _
    $region27: #{tpu_custom_call.1} parent=1 // pred_check_branch
      %173 = sbr.rel (0) target = $region29
    $region28: #{tpu_custom_call.1} parent=1 // pred_region
      %174 = dma.done [#allocation4], 256
    $region29: #{tpu_custom_call.1} parent=1 // pred_fallthru
      _
    %175 = vsyncpa [#allocation3], 1
    %176 = vsyncpa [#allocation6], 1
    %177 = vsyncpa [#allocation4], 1

</llo_original>
